<compile_context>
chip_gen: v7x
topology: tpu7x:2x2x1
jax: 0.10.0
libtpu: 0.0.40
codegen_flags: <defaults>
</compile_context>

<pallas_src>
import math

import jax
import jax.numpy as jnp
from jax.experimental import pallas as pl
from jax.experimental.pallas import tpu as pltpu


def _round_up(a: int, b: int) -> int:
    return ((a + b - 1) // b) * b


def _pick_tile(dim: int, target: int, align: int) -> int:
    """Largest tile <= target that is either the full dim or an `align`
    multiple dividing round_up(dim, align).  For 128-multiple feature dims
    this makes the K/N pad a no-op and keeps the output slice row-only."""
    if dim <= target:
        return dim
    padded = _round_up(dim, align)
    best = align
    t = align
    limit = min(target, padded)
    while t <= limit:
        if padded % t == 0:
            best = t
        t += align
    return best


def _conv1d_kernel_inplace(x_ref, w_ref, b_ref, o_ref):
    """f32 output: accumulate straight into the VMEM-resident output block."""
    @pl.when(pl.program_id(2) == 0)
    def _():
        o_ref[...] = jnp.broadcast_to(b_ref[...].astype(o_ref.dtype),
                                      o_ref.shape)

    o_ref[...] += jnp.dot(x_ref[...], w_ref[...],
                          preferred_element_type=jnp.float32)


def _conv1d_kernel_acc(x_ref, w_ref, b_ref, o_ref, acc_ref):
    """Non-f32 output: f32 scratch accumulator, single cast+store epilogue."""
    k = pl.program_id(2)

    @pl.when(k == 0)
    def _():
        acc_ref[...] = jnp.broadcast_to(b_ref[...].astype(jnp.float32),
                                        acc_ref.shape)

    acc_ref[...] += jnp.dot(x_ref[...], w_ref[...],
                            preferred_element_type=jnp.float32)

    @pl.when(k == pl.num_programs(2) - 1)
    def _():
        o_ref[...] = acc_ref[...].astype(o_ref.dtype)


def conv1d(x, weight, bias, *, tm=512, tn=512, tk=512):
    """y = x @ weight + bias over the last axis of x (Conv1D.forward)."""
    *lead, nx = x.shape
    nx_w, nf = weight.shape
    assert nx == nx_w, "weight must be (nx, nf)"
    M = int(math.prod(lead)) if lead else 1

    out_dtype = x.dtype
    if weight.dtype != x.dtype:
        weight = weight.astype(x.dtype)

    # ---- tile selection (divisor-aligned to avoid weight/x feature pads) ----
    if M <= tm:
        tm = _round_up(M, 8)
    else:
        tm = max(8, (tm // 8) * 8)
    tk = _pick_tile(nx, tk, 128)
    tn = _pick_tile(nf, tn, 128)

    Mp = _round_up(M, tm)
    Kp = _round_up(nx, tk)
    Np = _round_up(nf, tn)

    # v7x has two TensorCores: ensure the "parallel" output grid has >= 2
    # tiles when the N axis can be split cleanly (small-M / decode shapes).
    if Mp // tm == 1 and Np // tn == 1 and Np >= 256 and Np % 128 == 0:
        best = 128
        t = 128
        while t <= Np // 2:
            if Np % t == 0:
                best = t
            t += 128
        tn = best

    x2 = x.reshape(M, nx)
    if Mp != M or Kp != nx:
        x2 = jnp.pad(x2, ((0, Mp - M), (0, Kp - nx)))
    w2 = weight
    if Kp != nx or Np != nf:
        # TODO(synk): for non-128-multiple feature dims, pre-pad the weight
        # once outside the jitted forward instead of per call.
        w2 = jnp.pad(w2, ((0, Kp - nx), (0, Np - nf)))
    b2 = bias.reshape(1, nf)
    if Np != nf:
        b2 = jnp.pad(b2, ((0, 0), (0, Np - nf)))

    grid = (Mp // tm, Np // tn, Kp // tk)

    use_inplace = jnp.dtype(out_dtype) == jnp.dtype(jnp.float32)
    kernel = _conv1d_kernel_inplace if use_inplace else _conv1d_kernel_acc
    scratch = () if use_inplace else (pltpu.VMEM((tm, tn), jnp.float32),)

    # Double-buffered VMEM estimate; only raise the scoped limit if we might
    # exceed the smallest default (16 MiB on v5e).  Cap at v7x's 64 MiB.
    in_bytes = jnp.dtype(x.dtype).itemsize
    out_bytes = jnp.dtype(out_dtype).itemsize
    est = 2 * (tm * tk + tk * tn + tn) * in_bytes + 2 * tm * tn * out_bytes
    if not use_inplace:
        est += tm * tn * 4
    vmem_limit = None
    if est > 12 * 1024 * 1024:
        vmem_limit = min(_round_up(est + (4 << 20), 1 << 20), 64 << 20)

    grid_spec = pltpu.PrefetchScalarGridSpec(
        num_scalar_prefetch=0,
        grid=grid,
        in_specs=[
            pl.BlockSpec((tm, tk), lambda i, j, k: (i, k)),   # x tile
            pl.BlockSpec((tk, tn), lambda i, j, k: (k, j)),   # weight tile
            pl.BlockSpec((1, tn), lambda i, j, k: (0, j)),    # bias row
        ],
        out_specs=pl.BlockSpec((tm, tn), lambda i, j, k: (i, j)),
        scratch_shapes=scratch,
    )

    out = pl.pallas_call(
        kernel,
        out_shape=jax.ShapeDtypeStruct((Mp, Np), out_dtype),
        grid_spec=grid_spec,
        compiler_params=pltpu.CompilerParams(
            dimension_semantics=("parallel", "parallel", "arbitrary"),
            vmem_limit_bytes=vmem_limit),
    )(x2, w2, b2)

    if Np != nf:
        out = out[:, :nf]
    if Mp != M:
        out = out[:M]
    return out.reshape(*lead, nf)


def conv1d_ref(x, weight, bias):
    *lead, nx = x.shape
    y = x.reshape(-1, nx) @ weight + bias
    return y.reshape(*lead, weight.shape[1])


if __name__ == "__main__":
    key = jax.random.PRNGKey(0)
    kx, kw, kb = jax.random.split(key, 3)

    # --- small f32 check (exercises the accumulate-into-output kernel) ---
    B, S, nx, nf = 2, 8, 64, 128
    x = jax.random.normal(kx, (B, S, nx), jnp.float32)
    weight = 0.02 * jax.random.normal(kw, (nx, nf), jnp.float32)
    bias = 0.1 * jax.random.normal(kb, (nf,), jnp.float32)

    out = jax.block_until_ready(conv1d(x, weight, bias))
    ref = conv1d_ref(x, weight, bias)
    assert out.shape == (B, S, nf)
    assert jnp.allclose(out, ref, atol=1e-5, rtol=1e-5), "f32 mismatch"

    # --- small bf16 check (f32-scratch kernel, multi-tile grid, K split) ---
    B2, S2, nx2, nf2 = 2, 16, 256, 384
    xf = jax.random.normal(kx, (B2, S2, nx2), jnp.float32)
    wf = 0.02 * jax.random.normal(kw, (nx2, nf2), jnp.float32)
    bf = 0.1 * jax.random.normal(kb, (nf2,), jnp.float32)
    xb, wb, bb = (a.astype(jnp.bfloat16) for a in (xf, wf, bf))

    out2 = jax.block_until_ready(conv1d(xb, wb, bb, tk=128))
    ref2 = conv1d_ref(xb.astype(jnp.float32), wb.astype(jnp.float32),
                      bb.astype(jnp.float32))
    assert out2.shape == (B2, S2, nf2)
    assert out2.dtype == jnp.bfloat16
    assert jnp.allclose(out2.astype(jnp.float32), ref2,
                        atol=5e-2, rtol=5e-2), "bf16 mismatch"

    print("KERNEL_OK")
</pallas_src>

<mosaic_0001>
module attributes {stable_mosaic.version = 11 : i64} {
  func.func @_conv1d_kernel_inplace(%arg0: i32, %arg1: i32, %arg2: i32, %arg3: memref<16x64xf32, #tpu.memory_space<vmem>>, %arg4: memref<64x128xf32, #tpu.memory_space<vmem>>, %arg5: memref<1x128xf32, #tpu.memory_space<vmem>>, %arg6: memref<16x128xf32, #tpu.memory_space<vmem>>) attributes {dimension_semantics = [#tpu.dimension_semantics<parallel>, #tpu.dimension_semantics<parallel>, #tpu.dimension_semantics<arbitrary>], iteration_bounds = array<i64: 1, 1, 1>, scalar_prefetch = 0 : i64, scratch_operands = 0 : i64, tpu.core_type = #tpu.core_type<tc>, window_params = [{transform_indices = @transform_0, window_bounds = array<i64: 16, 64>}, {transform_indices = @transform_1, window_bounds = array<i64: 64, 128>}, {transform_indices = @transform_2, window_bounds = array<i64: 1, 128>}, {transform_indices = @transform_3, window_bounds = array<i64: 16, 128>}]} {
    %c0_i32 = arith.constant 0 : i32
    %0 = arith.cmpi eq, %arg2, %c0_i32 : i32
    %1 = arith.extui %0 : i1 to i32
    %c0_i32_0 = arith.constant 0 : i32
    %2 = arith.cmpi ne, %1, %c0_i32_0 : i32
    scf.if %2 {
      %c0_8 = arith.constant 0 : index
      %c0_9 = arith.constant 0 : index
      %9 = vector.load %arg5[%c0_8, %c0_9] : memref<1x128xf32, #tpu.memory_space<vmem>>, vector<1x128xf32>
      %10 = vector.shape_cast %9 : vector<1x128xf32> to vector<1x128xf32>
      %11 = vector.broadcast %10 : vector<1x128xf32> to vector<16x128xf32>
      %c0_10 = arith.constant 0 : index
      %c0_11 = arith.constant 0 : index
      %12 = vector.load %arg6[%c0_10, %c0_11] : memref<16x128xf32, #tpu.memory_space<vmem>>, vector<16x128xf32>
      tpu.vector_store %arg6[%c0_10, %c0_11], %11 {strides = array<i32>} : memref<16x128xf32, #tpu.memory_space<vmem>>, vector<16x128xf32>,
    } else {
    }
    %c0 = arith.constant 0 : index
    %c0_1 = arith.constant 0 : index
    %3 = vector.load %arg6[%c0, %c0_1] : memref<16x128xf32, #tpu.memory_space<vmem>>, vector<16x128xf32>
    %c0_2 = arith.constant 0 : index
    %c0_3 = arith.constant 0 : index
    %4 = vector.load %arg3[%c0_2, %c0_3] : memref<16x64xf32, #tpu.memory_space<vmem>>, vector<16x64xf32>
    %c0_4 = arith.constant 0 : index
    %c0_5 = arith.constant 0 : index
    %5 = vector.load %arg4[%c0_4, %c0_5] : memref<64x128xf32, #tpu.memory_space<vmem>>, vector<64x128xf32>
    %cst = arith.constant dense<0.000000e+00> : vector<16x128xf32>
    %6 = tpu.matmul %4, %5, %cst {dimension_numbers = #tpu.dot_dimension_numbers<[1], [0], [0], [1], [0, 0, 1, 1], [], []>} : vector<16x64xf32>, vector<64x128xf32>, vector<16x128xf32> -> vector<16x128xf32>
    %7 = arith.addf %3, %6 : vector<16x128xf32>
    %c0_6 = arith.constant 0 : index
    %c0_7 = arith.constant 0 : index
    %8 = vector.load %arg6[%c0_6, %c0_7] : memref<16x128xf32, #tpu.memory_space<vmem>>, vector<16x128xf32>
    tpu.vector_store %arg6[%c0_6, %c0_7], %7 {strides = array<i32>} : memref<16x128xf32, #tpu.memory_space<vmem>>, vector<16x128xf32>,
    return
  }
  func.func @transform_0(%arg0: i32, %arg1: i32, %arg2: i32) -> (i32, i32) {
    %c0_i32 = arith.constant 0 : i32
    return %arg0, %arg2 : i32, i32
  }
  func.func @transform_1(%arg0: i32, %arg1: i32, %arg2: i32) -> (i32, i32) {
    %c0_i32 = arith.constant 0 : i32
    return %arg2, %arg1 : i32, i32
  }
  func.func @transform_2(%arg0: i32, %arg1: i32, %arg2: i32) -> (i32, i32) {
    %c0_i32 = arith.constant 0 : i32
    %c0_i32_0 = arith.constant 0 : i32
    return %c0_i32, %arg1 : i32, i32
  }
  func.func @transform_3(%arg0: i32, %arg1: i32, %arg2: i32) -> (i32, i32) {
    %c0_i32 = arith.constant 0 : i32
    return %arg0, %arg1 : i32, i32
  }
}

</mosaic_0001>

<llo_original>
// kernel: tpu_custom_call.1
$region0: #{tpu_custom_call.1}
  #allocation0 [shape = 'u32[]', space=smem, size = 0x4, offset = 0x4, fixed_abs, tag = 'smem constant byte address 0x4 - core index']
  #allocation1 [shape = 'u32[144,128]{1,0:T(1,128)}', space=vmem, size = 0x12000, scoped, tag = 'internal scratch']
  %s0 = inlined_call_operand.hbm [shape: f32[16,64], index: 0, kind: input, shape index: {}]
  %s1 = inlined_call_operand.hbm [shape: f32[64,128], index: 1, kind: input, shape index: {}]
  %s2 = inlined_call_operand.vmem [shape: f32[1,128], index: 2, kind: input, shape index: {}]
  %s3 = inlined_call_operand.hbm [shape: f32[16,128], index: 3, kind: output, shape index: {}]
  %s4 = sld [smem:[#allocation0]]
  $region34: #{tpu_custom_call.1} parent=0
    _
  %s6 = ssub.s32 1, %s4
  %s7 = scalar_select 0, %s6, %s4
  $region1: #{tpu_custom_call.1} parent=0
    #allocation2 [shape = 'u8[8192]{0}', space=vmem, size = 0x2000, scoped, tag = 'input window, operand 0, single buffered']
    #allocation3 [shape = 's32[1]{0}', space=sflag, size = 0x4, scoped, tag = 'scoped memory for tpu_custom_call.1']
    #allocation4 [shape = 's32[1]{0}', space=sflag, size = 0x4, scoped, tag = 'scoped memory for tpu_custom_call.1']
    #allocation5 [shape = 'u8[32768]{0}', space=vmem, size = 0x8000, scoped, tag = 'input window, operand 1, single buffered']
    #allocation6 [shape = 's32[1]{0}', space=sflag, size = 0x4, scoped, tag = 'scoped memory for tpu_custom_call.1']
    #allocation7 [shape = 'u8[8192]{0}', space=vmem, size = 0x2000, scoped, tag = 'output window, operand 0, single buffered']
    %8 = vsyncpa [#allocation3], 0
    %9 = vsyncpa [#allocation6], 0
    %10 = vsyncpa [#allocation4], 0
    // Predicated region
    $region2: #{tpu_custom_call.1} parent=1 // pred_check
      _
    $region3: #{tpu_custom_call.1} parent=1 // pred_check_branch
      %12 = sbr.rel (0) target = $region5
    $region4: #{tpu_custom_call.1} parent=1 // pred_region
      %s14 = ssub.s32 256, 256
      %15 = vsyncadd [#allocation3], %s14
      %s16 = sshll.u32 [#allocation2], 4
      %s17 = int_to_ptr.vmem [resolvable:$true] %s16
      %22 = dma.hbm_to_vmem [thread:$0]  %s0, 256, %s17, [#allocation3], 128, 128, 8
    $region5: #{tpu_custom_call.1} parent=1 // pred_fallthru
      _
    // Predicated region
    $region6: #{tpu_custom_call.1} parent=1 // pred_check
      _
    $region7: #{tpu_custom_call.1} parent=1 // pred_check_branch
      %24 = sbr.rel (0) target = $region9
    $region8: #{tpu_custom_call.1} parent=1 // pred_region
      %s26 = ssub.s32 1024, 1024
      %27 = vsyncadd [#allocation6], %s26
      %s28 = sshll.u32 [#allocation5], 4
      %s29 = int_to_ptr.vmem [resolvable:$true] %s28
      %34 = dma.hbm_to_vmem [thread:$0]  %s1, 1024, %s29, [#allocation6], 128, 128, 8
    $region9: #{tpu_custom_call.1} parent=1 // pred_fallthru
      _
    // Predicated region
    $region10: #{tpu_custom_call.1} parent=1 // pred_check
      _
    $region11: #{tpu_custom_call.1} parent=1 // pred_check_branch
      %36 = sbr.rel (0) target = $region13
    $region12: #{tpu_custom_call.1} parent=1 // pred_region
      _
    $region13: #{tpu_custom_call.1} parent=1 // pred_fallthru
      _
    // Predicated region
    $region14: #{tpu_custom_call.1} parent=1 // pred_check
      _
    $region15: #{tpu_custom_call.1} parent=1 // pred_check_branch
      %38 = sbr.rel (0) target = $region17
    $region16: #{tpu_custom_call.1} parent=1 // pred_region
      %39 = dma.done [#allocation3], 256
    $region17: #{tpu_custom_call.1} parent=1 // pred_fallthru
      _
    // Predicated region
    $region18: #{tpu_custom_call.1} parent=1 // pred_check
      _
    $region19: #{tpu_custom_call.1} parent=1 // pred_check_branch
      %41 = sbr.rel (0) target = $region21
    $region20: #{tpu_custom_call.1} parent=1 // pred_region
      %42 = dma.done [#allocation6], 1024
    $region21: #{tpu_custom_call.1} parent=1 // pred_fallthru
      _
    %p43 = scmp.eq.s32.totalorder 0, 0
    // Predicated region
    $region22: #{tpu_custom_call.1} parent=1 // pred_check
      %p44 = pneg %p43
    $region23: #{tpu_custom_call.1} parent=1 // pred_check_branch
      %46 = sbr.rel (%p44) target = $region25
    $region24: #{tpu_custom_call.1} parent=1 // pred_region
      %v47 = vld [vmem:[%s2] sm:$0x1]
      %v49 = vlaneseq
      %v50 = vshrl.u32 %v49, 7
      %v51 = vsub.s32 0, %v50
      %v52 = vrot.slane %v47, %v51
      %54 = vst [vmem:[#allocation7] sm:$0xff] %v52
      %55 = vst [vmem:[#allocation7 + $0x8] sm:$0xff] %v52
    $region25: #{tpu_custom_call.1} parent=1 // pred_fallthru
      _
    %v56 = vld [vmem:[#allocation7] sm:$0xff]
    %v57 = vld [vmem:[#allocation7 + $0x8] sm:$0xff]
    %v58 = vld [vmem:[#allocation2] sm:$0xff]
    %v59 = vld [vmem:[#allocation2 + $0x8] sm:$0xff]
    %v60 = vld [vmem:[#allocation5] sm:$0xff]
    %v61 = vld [vmem:[#allocation5 + $0x8] sm:$0xff]
    %v62 = vld [vmem:[#allocation5 + $0x10] sm:$0xff]
    %v63 = vld [vmem:[#allocation5 + $0x18] sm:$0xff]
    %v64 = vld [vmem:[#allocation5 + $0x20] sm:$0xff]
    %v65 = vld [vmem:[#allocation5 + $0x28] sm:$0xff]
    %v66 = vld [vmem:[#allocation5 + $0x30] sm:$0xff]
    %v67 = vld [vmem:[#allocation5 + $0x38] sm:$0xff]
    %vm68 = vcmask 523264
    %v70 = vsel %vm68, %v58, 0
    %v73 = vsel %vm68, %v59, 0
    %75 = vmatprep.subr.mxu0 0.0
    %76 = vmatpush1.msra.mxu0 %v60
    %77 = vmatprep.subr.mxu0 0.0
    %78 = vmatpush1.msra.mxu0 %v61
    %79 = vmatprep.subr.mxu0 0.0
    %80 = vmatpush1.msra.mxu0 %v62
    %81 = vmatprep.subr.mxu0 0.0
    %82 = vmatpush1.msra.mxu0 %v63
    %83 = vmatprep.subr.mxu0 0.0
    %84 = vmatpush1.msra.mxu0 %v64
    %85 = vmatprep.subr.mxu0 0.0
    %86 = vmatpush1.msra.mxu0 %v65
    %87 = vmatprep.subr.mxu0 0.0
    %88 = vmatpush1.msra.mxu0 %v66
    %89 = vmatprep.subr.mxu0 0.0
    %90 = vmatpush1.msra.mxu0 %v67
    %91 = vmatprep.subr.mxu0 0.0
    %92 = vmatpush1.msra.mxu0 0.0
    %93 = vmatprep.subr.mxu0 0.0
    %94 = vmatpush1.msra.mxu0 0.0
    %95 = vmatprep.subr.mxu0 0.0
    %96 = vmatpush1.msra.mxu0 0.0
    %97 = vmatprep.subr.mxu0 0.0
    %98 = vmatpush1.msra.mxu0 0.0
    %99 = vmatprep.subr.mxu0 0.0
    %100 = vmatpush1.msra.mxu0 0.0
    %101 = vmatprep.subr.mxu0 0.0
    %102 = vmatpush1.msra.mxu0 0.0
    %103 = vmatprep.subr.mxu0 0.0
    %104 = vmatpush1.msra.mxu0 0.0
    %105 = vmatprep.subr.mxu0 0.0
    %106 = vmatpush1.msra.mxu0 0.0
    %107 = vmatprep.subr.mxu0 0.0
    %108 = vmatpush1.msra.mxu0 0.0
    %109 = vmatprep.subr.mxu0 0.0
    %110 = vmatpush1.msra.mxu0 0.0
    %111 = vmatprep.subr.mxu0 0.0
    %112 = vmatpush1.msra.mxu0 0.0
    %113 = vmatprep.subr.mxu0 0.0
    %114 = vmatpush1.msra.mxu0 0.0
    %115 = vmatprep.subr.mxu0 0.0
    %116 = vmatpush1.msra.mxu0 0.0
    %117 = vmatprep.subr.mxu0 0.0
    %118 = vmatpush1.msra.mxu0 0.0
    %119 = vmatprep.subr.mxu0 0.0
    %120 = vmatpush1.msra.mxu0 0.0
    %121 = vmatprep.subr.mxu0 0.0
    %122 = vmatpush1.msra.mxu0 0.0
    %123 = vmatprep.subr.mxu0 0.0
    %124 = vmatpush1.msra.mxu0 0.0
    %125 = vmatprep.subr.mxu0 0.0
    %126 = vmatpush1.msra.mxu0 0.0
    %127 = vmatprep.subr.mxu0 0.0
    %128 = vmatpush1.msra.mxu0 0.0
    %129 = vmatprep.subr.mxu0 0.0
    %130 = vmatpush1.msra.mxu0 0.0
    %131 = vmatprep.subr.mxu0 0.0
    %132 = vmatpush1.msra.mxu0 0.0
    %133 = vmatprep.subr.mxu0 0.0
    %134 = vmatpush1.msra.mxu0 0.0
    %135 = vmatprep.subr.mxu0 0.0
    %136 = vmatpush1.msra.mxu0 0.0
    %137 = vmatprep.subr.mxu0 0.0
    %138 = vmatpush1.msra.mxu0 0.0
    %139 = vmatprep.mubr.f32.mxu0 0.0
    %140 = vmatmul.mubr.f32.gmra.mrb[0].mxu0 %v70
    %v141 = vpop.f32.mrb[0].mxu0
    %v142 = vadd.f32 0.0, %v141
    %v143 = vpop.f32.mrb[0].mxu0
    %144 = vmatprep.mubr.f32.mxu0 0.0
    %145 = vmatmul.mubr.f32.gmra.mrb[0].mxu0 %v73
    %v146 = vpop.f32.mrb[0].mxu0
    %v147 = vadd.f32 0.0, %v146
    %v148 = vpop.f32.mrb[0].mxu0
    %149 = vdwg.mxu0
    %v150 = vadd.f32 %v56, %v142
    %v151 = vadd.f32 %v57, %v147
    %152 = vst [vmem:[#allocation7] sm:$0xff] %v150
    %153 = vst [vmem:[#allocation7 + $0x8] sm:$0xff] %v151
    // Predicated region
    $region26: #{tpu_custom_call.1} parent=1 // pred_check
      _
    $region27: #{tpu_custom_call.1} parent=1 // pred_check_branch
      %155 = sbr.rel (0) target = $region29
    $region28: #{tpu_custom_call.1} parent=1 // pred_region
      %s157 = ssub.s32 256, 256
      %158 = vsyncadd [#allocation4], %s157
      %s159 = sshll.u32 [#allocation7], 4
      %s160 = int_to_ptr.vmem [resolvable:$true] %s159
      %165 = dma.vmem_to_hbm [thread:$0]  %s160, 256, %s3, [#allocation4], 128, 128, 8
    $region29: #{tpu_custom_call.1} parent=1 // pred_fallthru
      _
    // Predicated region
    $region30: #{tpu_custom_call.1} parent=1 // pred_check
      _
    $region31: #{tpu_custom_call.1} parent=1 // pred_check_branch
      %167 = sbr.rel (0) target = $region33
    $region32: #{tpu_custom_call.1} parent=1 // pred_region
      %168 = dma.done [#allocation4], 256
    $region33: #{tpu_custom_call.1} parent=1 // pred_fallthru
      _
    %169 = vsyncpa [#allocation3], 1
    %170 = vsyncpa [#allocation6], 1
    %171 = vsyncpa [#allocation4], 1

</llo_original>
